<compile_context>
chip_gen: v7x
topology: tpu7x:2x2x1
jax: 0.10.0
libtpu: 0.0.40
codegen_flags: <defaults>
</compile_context>

<pallas_src>
import functools

import jax
import jax.numpy as jnp
from jax.experimental import pallas as pl
from jax.experimental.pallas import tpu as pltpu


def _round_up(n, m):
    return -(-n // m) * m


def _sublane_multiple(dtype):
    # Rows per packed sublane group: 8 for 4-byte, 16 for 2-byte, 32 for 1-byte.
    return 8 * max(1, 4 // jnp.dtype(dtype).itemsize)


# ----------------------------------------------------------------------------
# Kernels
# ----------------------------------------------------------------------------
def _logit_head_kernel_acc(x_ref, wt_ref, b_ref, scale_ref, o_ref,
                           acc_ref, xsq_ref, wsq_ref, *,
                           feature_norm, head_norm):
    """3-D grid (j: C tiles, i: B tiles, k: K tiles), K innermost, f32 accumulator."""
    i = pl.program_id(1)
    k = pl.program_id(2)
    nk = pl.num_programs(2)

    @pl.when(k == 0)
    def _init():
        acc_ref[...] = jnp.zeros_like(acc_ref)
        if feature_norm:
            xsq_ref[...] = jnp.zeros_like(xsq_ref)

    x = x_ref[...]                      # [tB, tK], native dtype (bf16 stays bf16)
    w = wt_ref[...]                     # [tK, tC], K-major (pre-transposed weight)

    acc_ref[...] += jnp.dot(x, w, preferred_element_type=jnp.float32)

    if feature_norm:
        xf = x.astype(jnp.float32)
        xsq_ref[...] += jnp.sum(xf * xf, axis=1, keepdims=True)          # [tB, 1]

    if head_norm:
        # Head norms depend only on (j, k): accumulate them once per C tile
        # (first B tile) into a persistent scratch and reuse them for every other
        # B tile of the same j.  Valid because only the j axis is
        # megacore-parallel and i/k run sequentially in order on each core.
        @pl.when((i == 0) & (k == 0))
        def _zero_wsq():
            wsq_ref[...] = jnp.zeros_like(wsq_ref)

        @pl.when(i == 0)
        def _acc_wsq():
            wf = w.astype(jnp.float32)
            ones_row = jnp.ones((1, wf.shape[0]), dtype=jnp.float32)
            wsq_ref[...] += jnp.dot(ones_row, wf * wf,
                                    preferred_element_type=jnp.float32)  # [1, tC]

    @pl.when(k == nk - 1)
    def _finalize():
        out = acc_ref[...]                                               # [tB, tC] f32
        scale = scale_ref[0]
        if feature_norm:
            # F.normalize: x * rsqrt(max(||x||^2, 1e-24)); row scaling commutes
            # with the matmul so it is applied to the accumulated logits.
            out = out * jax.lax.rsqrt(jnp.maximum(xsq_ref[...], 1e-24))
        out = out + b_ref[...].astype(jnp.float32)
        if head_norm:
            # Clamp so zero-padded class columns give 0, not NaN.
            out = out * (jax.lax.rsqrt(jnp.maximum(wsq_ref[...], 1e-30)) * scale)
        else:
            out = out * scale
        o_ref[...] = out.astype(o_ref.dtype)


def _logit_head_kernel_noacc(x_ref, wt_ref, b_ref, scale_ref, o_ref, wsq_ref, *,
                             feature_norm, head_norm):
    """2-D grid (j: C tiles, i: B tiles); whole feature dim resident in one K tile."""
    i = pl.program_id(1)

    x = x_ref[...]                      # [tB, Dp]
    w = wt_ref[...]                     # [Dp, tC]
    out = jnp.dot(x, w, preferred_element_type=jnp.float32)
    scale = scale_ref[0]

    if feature_norm:
        xf = x.astype(jnp.float32)
        xsq = jnp.sum(xf * xf, axis=1, keepdims=True)
        out = out * jax.lax.rsqrt(jnp.maximum(xsq, 1e-24))

    out = out + b_ref[...].astype(jnp.float32)

    if head_norm:
        @pl.when(i == 0)
        def _compute_wsq():
            wf = w.astype(jnp.float32)
            ones_row = jnp.ones((1, wf.shape[0]), dtype=jnp.float32)
            wsq_ref[...] = jnp.dot(ones_row, wf * wf,
                                   preferred_element_type=jnp.float32)
        out = out * (jax.lax.rsqrt(jnp.maximum(wsq_ref[...], 1e-30)) * scale)
    else:
        out = out * scale

    o_ref[...] = out.astype(o_ref.dtype)


# ----------------------------------------------------------------------------
# Tiling / VMEM heuristics
# ----------------------------------------------------------------------------
def _vmem_tile_bytes(tB, tC, tK, x_bytes, w_bytes, o_bytes, b_bytes):
    # Double-buffered input/output tiles + f32 scratch (lane/sublane padded).
    io = 2 * (tB * tK * x_bytes + tK * tC * w_bytes + tB * tC * o_bytes + tC * b_bytes)
    scratch = (tB * tC + tB * 128 + 8 * tC) * 4
    return io + scratch


def _choose_tiles(Bp0, Cp0, Dp0, sub, x_bytes, w_bytes, o_bytes, b_bytes, budget):
    # Weight-stream arithmetic intensity is ~tB flops per weight byte (bf16), so
    # keep tB large (v6e balance ~640 flops/B, v7x ~310) and K as deep as VMEM
    # allows to amortize the ~0.35us per-grid-step overhead and the f32
    # accumulator read-modify-write.
    tB = min(Bp0, _round_up(768, sub))
    tC = min(Cp0, 512)
    tK = min(Dp0, 4096)
    for _ in range(32):
        if _vmem_tile_bytes(tB, tC, tK, x_bytes, w_bytes, o_bytes, b_bytes) <= budget:
            break
        if tK > 512:
            tK = max(512, _round_up(tK // 2, 128))
        elif tC > 256:
            tC = max(256, _round_up(tC // 2, 128))
        elif tB > sub:
            tB = max(sub, _round_up(max(tB // 2, sub), sub))
        else:
            break
    return tB, tC, tK


# ----------------------------------------------------------------------------
# Public wrapper
# ----------------------------------------------------------------------------
def logit_head(x, weight, bias, *, feature_norm=False, head_norm=False,
               logit_scale=None, tile_b=None, tile_c=None, tile_k=None):
    """x: [B, D], weight: [C, D] (nn.Linear layout), bias: [C] -> logits [B, C]."""
    B, D = x.shape
    C, D2 = weight.shape
    assert D == D2, (D, D2)
    assert bias.shape == (C,), bias.shape

    x_bytes = jnp.dtype(x.dtype).itemsize
    w_bytes = jnp.dtype(weight.dtype).itemsize
    o_bytes = x_bytes
    b_bytes = jnp.dtype(bias.dtype).itemsize

    sub = _sublane_multiple(x.dtype)          # 8 (f32) / 16 (bf16) / 32 (int8)
    Bp0 = _round_up(B, sub)
    Cp0 = _round_up(C, 128)
    Dp0 = _round_up(D, 128)

    # Generation-aware VMEM budget (128 MiB physical on v5e/v6e, 64 MiB on v7x).
    try:
        vmem_cap = int(pltpu.get_tpu_info().vmem_capacity_bytes)
    except Exception:  # pragma: no cover - query unavailable
        vmem_cap = 64 << 20
    if vmem_cap < (16 << 20):
        vmem_cap = 64 << 20
    vmem_budget = max(32 << 20, int(vmem_cap * 0.75))

    tB, tC, tK = _choose_tiles(Bp0, Cp0, Dp0, sub, x_bytes, w_bytes, o_bytes,
                               b_bytes, vmem_budget)
    # Explicit user overrides, snapped to legal (sublane, lane) multiples.
    if tile_b is not None:
        tB = max(sub, _round_up(min(tile_b, Bp0), sub))
    if tile_c is not None:
        tC = max(128, _round_up(min(tile_c, Cp0), 128))
    if tile_k is not None:
        tK = max(128, _round_up(min(tile_k, Dp0), 128))

    single_k = tK >= Dp0
    if single_k:
        tK = Dp0

    Bp = _round_up(Bp0, tB)
    Cp = _round_up(Cp0, tC)
    Dp = _round_up(Dp0, tK)

    # Zero padding is neutral for the matmul and both norm reductions; the result
    # is sliced back to [B, C].  Weight is transposed once to K-major [Dp, Cp] so
    # the kernel uses the canonical MXU contraction (no per-step weight relayout).
    xp = jnp.pad(x, ((0, Bp - B), (0, Dp - D)))
    wtp = jnp.pad(weight, ((0, Cp - C), (0, Dp - D))).T          # [Dp, Cp]
    bp = jnp.pad(bias, (0, Cp - C)).reshape(1, Cp)

    # logit_scale: PyTorch gates on truthiness (`if self.logit_scale:`), so a
    # falsy scale means "no scaling".  Passed as an SMEM scalar so changing the
    # learned value does not trigger recompilation.
    if logit_scale is None:
        scale_value = 1.0
    elif isinstance(logit_scale, (bool, int, float)):
        scale_value = float(logit_scale) if logit_scale else 1.0
    else:
        scale_value = logit_scale        # traced / learned scalar (assumed truthy)
    scale_arr = jnp.asarray(scale_value, dtype=jnp.float32).reshape((1,))

    nj, ni, nk = Cp // tC, Bp // tB, Dp // tK

    if single_k:
        kernel = functools.partial(_logit_head_kernel_noacc,
                                   feature_norm=feature_norm, head_norm=head_norm)
        grid = (nj, ni)
        in_specs = [
            pl.BlockSpec((tB, Dp), lambda j, i: (i, 0)),          # x tile
            pl.BlockSpec((Dp, tC), lambda j, i: (0, j)),          # W^T tile (K-major)
            pl.BlockSpec((1, tC), lambda j, i: (0, j)),           # bias tile
            pl.BlockSpec(memory_space=pltpu.MemorySpace.SMEM),    # logit_scale scalar
        ]
        out_specs = pl.BlockSpec((tB, tC), lambda j, i: (i, j))
        scratch_shapes = [pltpu.VMEM((1, tC), jnp.float32)]       # cached sum(W_c^2)
        dim_sems = ("parallel", "arbitrary")
    else:
        kernel = functools.partial(_logit_head_kernel_acc,
                                   feature_norm=feature_norm, head_norm=head_norm)
        grid = (nj, ni, nk)
        in_specs = [
            pl.BlockSpec((tB, tK), lambda j, i, k: (i, k)),       # x tile
            pl.BlockSpec((tK, tC), lambda j, i, k: (k, j)),       # W^T tile (K-major)
            pl.BlockSpec((1, tC), lambda j, i, k: (0, j)),        # bias tile
            pl.BlockSpec(memory_space=pltpu.MemorySpace.SMEM),    # logit_scale scalar
        ]
        out_specs = pl.BlockSpec((tB, tC), lambda j, i, k: (i, j))
        scratch_shapes = [
            pltpu.VMEM((tB, tC), jnp.float32),   # matmul accumulator
            pltpu.VMEM((tB, 1), jnp.float32),    # sum(x^2) over D
            pltpu.VMEM((1, tC), jnp.float32),    # cached sum(W_c^2) over D
        ]
        # Megacore split only on the C axis (per v7x guidance); B/K stay ordered
        # so the i==0 head-norm caching is valid on every core.
        dim_sems = ("parallel", "arbitrary", "arbitrary")

    footprint = _vmem_tile_bytes(tB, tC, tK, x_bytes, w_bytes, o_bytes, b_bytes)
    vmem_limit = int(min(vmem_cap, max(vmem_budget, footprint + (8 << 20))))

    # Advisory cost: account for the actual re-read traffic (W re-read Bp/tB times,
    # x re-read Cp/tC times), not a single pass over each operand.
    cost = pl.CostEstimate(
        flops=2 * Bp * Cp * Dp + 4 * Bp * Cp,
        transcendentals=(Bp if feature_norm else 0) + (Cp if head_norm else 0),
        bytes_accessed=(Bp * Dp * x_bytes) * nj + (Dp * Cp * w_bytes) * ni
        + Bp * Cp * o_bytes + Cp * b_bytes)

    out_padded = pl.pallas_call(
        kernel,
        out_shape=jax.ShapeDtypeStruct((Bp, Cp), x.dtype),
        grid_spec=pltpu.PrefetchScalarGridSpec(
            num_scalar_prefetch=0,
            grid=grid,
            in_specs=in_specs,
            out_specs=out_specs,
            scratch_shapes=scratch_shapes),
        compiler_params=pltpu.CompilerParams(
            dimension_semantics=dim_sems,
            vmem_limit_bytes=vmem_limit),
        cost_estimate=cost,
    )(xp, wtp, bp, scale_arr)

    return out_padded[:B, :C]


# ----------------------------------------------------------------------------
# Reference + self-test
# ----------------------------------------------------------------------------
def _reference(x, weight, bias, *, feature_norm=False, head_norm=False,
               logit_scale=None):
    xf = x.astype(jnp.float32)
    wf = weight.astype(jnp.float32)
    bf = bias.astype(jnp.float32)
    if feature_norm:
        xf = xf / jnp.maximum(jnp.linalg.norm(xf, axis=1, keepdims=True), 1e-12)
    out = jnp.dot(xf, wf.T, precision=jax.lax.Precision.HIGHEST) + bf
    if head_norm:
        out = out / jnp.linalg.norm(wf, axis=1)
    if logit_scale:
        out = out * logit_scale
    return out


if __name__ == "__main__":
    logit_scale = 4.60517  # ln(100), CLIP-style

    # Case 1: small shapes implied by the module (batch=2, hidden=32, classes=16).
    B, D, C = 2, 32, 16
    kx, kw, kb = jax.random.split(jax.random.PRNGKey(0), 3)
    x = jax.random.normal(kx, (B, D), dtype=jnp.float32)
    weight = jax.random.normal(kw, (C, D), dtype=jnp.float32) * 0.05   # nn.Linear [out, in]
    bias = jax.random.normal(kb, (C,), dtype=jnp.float32) * 0.01       # nn.Linear [out]

    out = jax.block_until_ready(
        logit_head(x, weight, bias, feature_norm=True, head_norm=True,
                   logit_scale=logit_scale))
    ref = _reference(x, weight, bias, feature_norm=True, head_norm=True,
                     logit_scale=logit_scale)
    assert out.shape == (B, C)
    assert jnp.allclose(out, ref, atol=1e-3, rtol=1e-3), "case 1 mismatch vs reference"

    # Case 2: multi-tile 3-D grid (exercises K accumulation, xsq accumulation and
    # the i==0 head-norm caching across B tiles).
    B2, D2, C2 = 16, 384, 384
    kx2, kw2, kb2 = jax.random.split(jax.random.PRNGKey(1), 3)
    x2 = jax.random.normal(kx2, (B2, D2), dtype=jnp.float32)
    w2 = jax.random.normal(kw2, (C2, D2), dtype=jnp.float32) * 0.05
    b2 = jax.random.normal(kb2, (C2,), dtype=jnp.float32) * 0.01
    out2 = jax.block_until_ready(
        logit_head(x2, w2, b2, feature_norm=True, head_norm=True,
                   logit_scale=logit_scale, tile_b=8, tile_c=128, tile_k=128))
    ref2 = _reference(x2, w2, b2, feature_norm=True, head_norm=True,
                      logit_scale=logit_scale)
    assert jnp.allclose(out2, ref2, atol=1e-3, rtol=1e-3), "case 2 mismatch vs reference"

    # Case 3: plain Linear path (no norms, no scale) on the fused single-K kernel.
    out3 = jax.block_until_ready(
        logit_head(x2, w2, b2, feature_norm=False, head_norm=False, logit_scale=None))
    ref3 = _reference(x2, w2, b2, feature_norm=False, head_norm=False, logit_scale=None)
    assert jnp.allclose(out3, ref3, atol=1e-3, rtol=1e-3), "case 3 mismatch vs reference"

    print("KERNEL_OK")
</pallas_src>

<mosaic_0001>
module attributes {stable_mosaic.version = 11 : i64} {
  func.func @_logit_head_kernel_noacc(%arg0: i32, %arg1: i32, %arg2: memref<8x128xf32, #tpu.memory_space<vmem>>, %arg3: memref<128x128xf32, #tpu.memory_space<vmem>>, %arg4: memref<1x128xf32, #tpu.memory_space<vmem>>, %arg5: memref<1xf32, #tpu.memory_space<smem>>, %arg6: memref<8x128xf32, #tpu.memory_space<vmem>>, %arg7: memref<1x128xf32, #tpu.memory_space<vmem>>) attributes {dimension_semantics = [#tpu.dimension_semantics<parallel>, #tpu.dimension_semantics<arbitrary>], iteration_bounds = array<i64: 1, 1>, scalar_prefetch = 0 : i64, scratch_operands = 1 : i64, tpu.core_type = #tpu.core_type<tc>, window_params = [{transform_indices = @transform_0, window_bounds = array<i64: 8, 128>}, {transform_indices = @transform_1, window_bounds = array<i64: 128, 128>}, {transform_indices = @transform_2, window_bounds = array<i64: 1, 128>}, {transform_indices = @transform_3, window_bounds = array<i64: 1>}, {transform_indices = @transform_4, window_bounds = array<i64: 8, 128>}]} {
    %c0 = arith.constant 0 : index
    %c0_0 = arith.constant 0 : index
    %0 = vector.load %arg2[%c0, %c0_0] : memref<8x128xf32, #tpu.memory_space<vmem>>, vector<8x128xf32>
    %c0_1 = arith.constant 0 : index
    %c0_2 = arith.constant 0 : index
    %1 = vector.load %arg3[%c0_1, %c0_2] : memref<128x128xf32, #tpu.memory_space<vmem>>, vector<128x128xf32>
    %cst = arith.constant dense<0.000000e+00> : vector<8x128xf32>
    %2 = tpu.matmul %0, %1, %cst {dimension_numbers = #tpu.dot_dimension_numbers<[1], [0], [0], [1], [0, 0, 1, 1], [], []>} : vector<8x128xf32>, vector<128x128xf32>, vector<8x128xf32> -> vector<8x128xf32>
    %c0_3 = arith.constant 0 : index
    %3 = memref.load %arg5[%c0_3] : memref<1xf32, #tpu.memory_space<smem>>
    %4 = arith.mulf %0, %0 : vector<8x128xf32>
    %cst_4 = arith.constant dense<0.000000e+00> : vector<8xf32>
    %5 = vector.multi_reduction <add>, %4, %cst_4 [1] : vector<8x128xf32> to vector<8xf32>
    %6 = vector.shape_cast %5 : vector<8xf32> to vector<8x1xf32>
    %cst_5 = arith.constant 1.000000e-24 : f32
    %7 = vector.broadcast %cst_5 : f32 to vector<8x1xf32>
    %8 = arith.maximumf %6, %7 : vector<8x1xf32>
    %9 = math.rsqrt %8 : vector<8x1xf32>
    %10 = vector.broadcast %9 : vector<8x1xf32> to vector<8x128xf32>
    %11 = arith.mulf %2, %10 : vector<8x128xf32>
    %c0_6 = arith.constant 0 : index
    %c0_7 = arith.constant 0 : index
    %12 = vector.load %arg4[%c0_6, %c0_7] : memref<1x128xf32, #tpu.memory_space<vmem>>, vector<1x128xf32>
    %13 = vector.broadcast %12 : vector<1x128xf32> to vector<8x128xf32>
    %14 = arith.addf %11, %13 : vector<8x128xf32>
    %c0_i32 = arith.constant 0 : i32
    %15 = arith.cmpi eq, %arg1, %c0_i32 : i32
    %16 = arith.extui %15 : i1 to i32
    %c0_i32_8 = arith.constant 0 : i32
    %17 = arith.cmpi ne, %16, %c0_i32_8 : i32
    scf.if %17 {
      %cst_14 = arith.constant 1.000000e+00 : f32
      %27 = vector.broadcast %cst_14 : f32 to vector<1x128xf32>
      %28 = arith.mulf %1, %1 : vector<128x128xf32>
      %cst_15 = arith.constant dense<0.000000e+00> : vector<1x128xf32>
      %29 = tpu.matmul %27, %28, %cst_15 {dimension_numbers = #tpu.dot_dimension_numbers<[1], [0], [0], [1], [0, 0, 1, 1], [], []>} : vector<1x128xf32>, vector<128x128xf32>, vector<1x128xf32> -> vector<1x128xf32>
      %c0_16 = arith.constant 0 : index
      %c0_17 = arith.constant 0 : index
      %30 = vector.load %arg7[%c0_16, %c0_17] : memref<1x128xf32, #tpu.memory_space<vmem>>, vector<1x128xf32>
      tpu.vector_store %arg7[%c0_16, %c0_17], %29 {strides = array<i32>} : memref<1x128xf32, #tpu.memory_space<vmem>>, vector<1x128xf32>,
    } else {
    }
    %c0_9 = arith.constant 0 : index
    %c0_10 = arith.constant 0 : index
    %18 = vector.load %arg7[%c0_9, %c0_10] : memref<1x128xf32, #tpu.memory_space<vmem>>, vector<1x128xf32>
    %cst_11 = arith.constant 1.000000e-30 : f32
    %19 = vector.broadcast %cst_11 : f32 to vector<1x128xf32>
    %20 = arith.maximumf %18, %19 : vector<1x128xf32>
    %21 = math.rsqrt %20 : vector<1x128xf32>
    %22 = vector.broadcast %3 : f32 to vector<1x128xf32>
    %23 = arith.mulf %21, %22 : vector<1x128xf32>
    %24 = vector.broadcast %23 : vector<1x128xf32> to vector<8x128xf32>
    %25 = arith.mulf %14, %24 : vector<8x128xf32>
    %c0_12 = arith.constant 0 : index
    %c0_13 = arith.constant 0 : index
    %26 = vector.load %arg6[%c0_12, %c0_13] : memref<8x128xf32, #tpu.memory_space<vmem>>, vector<8x128xf32>
    tpu.vector_store %arg6[%c0_12, %c0_13], %25 {strides = array<i32>} : memref<8x128xf32, #tpu.memory_space<vmem>>, vector<8x128xf32>,
    return
  }
  func.func @transform_0(%arg0: i32, %arg1: i32) -> (i32, i32) {
    %c0_i32 = arith.constant 0 : i32
    %c0_i32_0 = arith.constant 0 : i32
    return %arg1, %c0_i32 : i32, i32
  }
  func.func @transform_1(%arg0: i32, %arg1: i32) -> (i32, i32) {
    %c0_i32 = arith.constant 0 : i32
    %c0_i32_0 = arith.constant 0 : i32
    return %c0_i32, %arg0 : i32, i32
  }
  func.func @transform_2(%arg0: i32, %arg1: i32) -> (i32, i32) {
    %c0_i32 = arith.constant 0 : i32
    %c0_i32_0 = arith.constant 0 : i32
    return %c0_i32, %arg0 : i32, i32
  }
  func.func @transform_3(%arg0: i32, %arg1: i32) -> i32 {
    %c0_i32 = arith.constant 0 : i32
    %c0_i32_0 = arith.constant 0 : i32
    return %c0_i32 : i32
  }
  func.func @transform_4(%arg0: i32, %arg1: i32) -> (i32, i32) {
    %c0_i32 = arith.constant 0 : i32
    return %arg1, %arg0 : i32, i32
  }
}

</mosaic_0001>

<llo_original>
// kernel: tpu_custom_call.1
$region0: #{tpu_custom_call.1}
  #allocation0 [shape = 'u32[]', space=smem, size = 0x4, offset = 0x4, fixed_abs, tag = 'smem constant byte address 0x4 - core index']
  #allocation1 [shape = 'u32[144,128]{1,0:T(1,128)}', space=vmem, size = 0x12000, scoped, tag = 'internal scratch']
  #allocation2 [shape = 'f32[1,128]{1,0:T(1,128)}', space=vmem, size = 0x200, scoped, tag = 'scratch operand']
  #allocation3 [shape = 'f32[1]{0:T(128)S(6)}', space=smem, size = 0x200, scoped, tag = 'scoped memory for tpu_custom_call.1']
  %s0 = inlined_call_operand.hbm [shape: f32[8,128], index: 0, kind: input, shape index: {}]
  %s1 = inlined_call_operand.hbm [shape: f32[128,128], index: 1, kind: input, shape index: {}]
  %s2 = inlined_call_operand.vmem [shape: f32[1,128], index: 2, kind: input, shape index: {}]
  %s3 = inlined_call_operand.<no memory space> [shape: f32[1], index: 3, kind: input, shape index: {}]
  %s4 = inlined_call_operand.hbm [shape: f32[8,128], index: 4, kind: output, shape index: {}]
  %s5 = sld [smem:[#allocation0]]
  $region38: #{tpu_custom_call.1} parent=0
    _
  %s7 = ssub.s32 1, %s5
  %s8 = scalar_select 0, %s7, %s5
  %9 = sst [smem:[#allocation3]] %s3
  $region1: #{tpu_custom_call.1} parent=0
    #allocation4 [shape = 'u8[4096]{0}', space=vmem, size = 0x1000, scoped, tag = 'input window, operand 0, single buffered']
    #allocation5 [shape = 's32[1]{0}', space=sflag, size = 0x4, scoped, tag = 'scoped memory for tpu_custom_call.1']
    #allocation6 [shape = 's32[1]{0}', space=sflag, size = 0x4, scoped, tag = 'scoped memory for tpu_custom_call.1']
    #allocation7 [shape = 'u8[65536]{0}', space=vmem, size = 0x10000, scoped, tag = 'input window, operand 1, single buffered']
    #allocation8 [shape = 's32[1]{0}', space=sflag, size = 0x4, scoped, tag = 'scoped memory for tpu_custom_call.1']
    #allocation9 [shape = 'u8[4096]{0}', space=vmem, size = 0x1000, scoped, tag = 'output window, operand 0, single buffered']
    %10 = vsyncpa [#allocation5], 0
    %11 = vsyncpa [#allocation8], 0
    %12 = vsyncpa [#allocation6], 0
    // Predicated region
    $region2: #{tpu_custom_call.1} parent=1 // pred_check
      _
    $region3: #{tpu_custom_call.1} parent=1 // pred_check_branch
      %14 = sbr.rel (0) target = $region5
    $region4: #{tpu_custom_call.1} parent=1 // pred_region
      %s16 = ssub.s32 128, 128
      %17 = vsyncadd [#allocation5], %s16
      %s19 = sshll.u32 [#allocation4], 4
      %s20 = int_to_ptr.vmem [resolvable:$true] %s19
      %22 = dma.hbm_to_vmem [thread:$0]  %s0, 128, %s20, [#allocation5]
    $region5: #{tpu_custom_call.1} parent=1 // pred_fallthru
      _
    // Predicated region
    $region6: #{tpu_custom_call.1} parent=1 // pred_check
      _
    $region7: #{tpu_custom_call.1} parent=1 // pred_check_branch
      %24 = sbr.rel (0) target = $region9
    $region8: #{tpu_custom_call.1} parent=1 // pred_region
      %s26 = ssub.s32 2048, 2048
      %27 = vsyncadd [#allocation8], %s26
      %s28 = sshll.u32 [#allocation7], 4
      %s29 = int_to_ptr.vmem [resolvable:$true] %s28
      %34 = dma.hbm_to_vmem [thread:$0]  %s1, 2048, %s29, [#allocation8], 128, 128, 8
    $region9: #{tpu_custom_call.1} parent=1 // pred_fallthru
      _
    // Predicated region
    $region10: #{tpu_custom_call.1} parent=1 // pred_check
      _
    $region11: #{tpu_custom_call.1} parent=1 // pred_check_branch
      %36 = sbr.rel (0) target = $region13
    $region12: #{tpu_custom_call.1} parent=1 // pred_region
      _
    $region13: #{tpu_custom_call.1} parent=1 // pred_fallthru
      _
    // Predicated region
    $region14: #{tpu_custom_call.1} parent=1 // pred_check
      _
    $region15: #{tpu_custom_call.1} parent=1 // pred_check_branch
      %38 = sbr.rel (0) target = $region17
    $region16: #{tpu_custom_call.1} parent=1 // pred_region
      _
    $region17: #{tpu_custom_call.1} parent=1 // pred_fallthru
      _
    // Predicated region
    $region18: #{tpu_custom_call.1} parent=1 // pred_check
      _
    $region19: #{tpu_custom_call.1} parent=1 // pred_check_branch
      %40 = sbr.rel (0) target = $region21
    $region20: #{tpu_custom_call.1} parent=1 // pred_region
      %41 = dma.done [#allocation5], 128
    $region21: #{tpu_custom_call.1} parent=1 // pred_fallthru
      _
    // Predicated region
    $region22: #{tpu_custom_call.1} parent=1 // pred_check
      _
    $region23: #{tpu_custom_call.1} parent=1 // pred_check_branch
      %43 = sbr.rel (0) target = $region25
    $region24: #{tpu_custom_call.1} parent=1 // pred_region
      %44 = dma.done [#allocation8], 2048
    $region25: #{tpu_custom_call.1} parent=1 // pred_fallthru
      _
    %v45 = vld [vmem:[#allocation4] sm:$0xff]
    %v46 = vld [vmem:[#allocation7] sm:$0xff]
    %v47 = vld [vmem:[#allocation7 + $0x8] sm:$0xff]
    %v48 = vld [vmem:[#allocation7 + $0x10] sm:$0xff]
    %v49 = vld [vmem:[#allocation7 + $0x18] sm:$0xff]
    %v50 = vld [vmem:[#allocation7 + $0x20] sm:$0xff]
    %v51 = vld [vmem:[#allocation7 + $0x28] sm:$0xff]
    %v52 = vld [vmem:[#allocation7 + $0x30] sm:$0xff]
    %v53 = vld [vmem:[#allocation7 + $0x38] sm:$0xff]
    %v54 = vld [vmem:[#allocation7 + $0x40] sm:$0xff]
    %v55 = vld [vmem:[#allocation7 + $0x48] sm:$0xff]
    %v56 = vld [vmem:[#allocation7 + $0x50] sm:$0xff]
    %v57 = vld [vmem:[#allocation7 + $0x58] sm:$0xff]
    %v58 = vld [vmem:[#allocation7 + $0x60] sm:$0xff]
    %v59 = vld [vmem:[#allocation7 + $0x68] sm:$0xff]
    %v60 = vld [vmem:[#allocation7 + $0x70] sm:$0xff]
    %v61 = vld [vmem:[#allocation7 + $0x78] sm:$0xff]
    %62 = vmatprep.subr.mxu0 0.0
    %63 = vmatpush1.msra.mxu0 %v46
    %64 = vmatprep.subr.mxu0 0.0
    %65 = vmatpush1.msra.mxu0 %v47
    %66 = vmatprep.subr.mxu0 0.0
    %67 = vmatpush1.msra.mxu0 %v48
    %68 = vmatprep.subr.mxu0 0.0
    %69 = vmatpush1.msra.mxu0 %v49
    %70 = vmatprep.subr.mxu0 0.0
    %71 = vmatpush1.msra.mxu0 %v50
    %72 = vmatprep.subr.mxu0 0.0
    %73 = vmatpush1.msra.mxu0 %v51
    %74 = vmatprep.subr.mxu0 0.0
    %75 = vmatpush1.msra.mxu0 %v52
    %76 = vmatprep.subr.mxu0 0.0
    %77 = vmatpush1.msra.mxu0 %v53
    %78 = vmatprep.subr.mxu0 0.0
    %79 = vmatpush1.msra.mxu0 %v54
    %80 = vmatprep.subr.mxu0 0.0
    %81 = vmatpush1.msra.mxu0 %v55
    %82 = vmatprep.subr.mxu0 0.0
    %83 = vmatpush1.msra.mxu0 %v56
    %84 = vmatprep.subr.mxu0 0.0
    %85 = vmatpush1.msra.mxu0 %v57
    %86 = vmatprep.subr.mxu0 0.0
    %87 = vmatpush1.msra.mxu0 %v58
    %88 = vmatprep.subr.mxu0 0.0
    %89 = vmatpush1.msra.mxu0 %v59
    %90 = vmatprep.subr.mxu0 0.0
    %91 = vmatpush1.msra.mxu0 %v60
    %92 = vmatprep.subr.mxu0 0.0
    %93 = vmatpush1.msra.mxu0 %v61
    %94 = vmatprep.subr.mxu0 0.0
    %95 = vmatpush1.msra.mxu0 0.0
    %96 = vmatprep.subr.mxu0 0.0
    %97 = vmatpush1.msra.mxu0 0.0
    %98 = vmatprep.subr.mxu0 0.0
    %99 = vmatpush1.msra.mxu0 0.0
    %100 = vmatprep.subr.mxu0 0.0
    %101 = vmatpush1.msra.mxu0 0.0
    %102 = vmatprep.subr.mxu0 0.0
    %103 = vmatpush1.msra.mxu0 0.0
    %104 = vmatprep.subr.mxu0 0.0
    %105 = vmatpush1.msra.mxu0 0.0
    %106 = vmatprep.subr.mxu0 0.0
    %107 = vmatpush1.msra.mxu0 0.0
    %108 = vmatprep.subr.mxu0 0.0
    %109 = vmatpush1.msra.mxu0 0.0
    %110 = vmatprep.subr.mxu0 0.0
    %111 = vmatpush1.msra.mxu0 0.0
    %112 = vmatprep.subr.mxu0 0.0
    %113 = vmatpush1.msra.mxu0 0.0
    %114 = vmatprep.subr.mxu0 0.0
    %115 = vmatpush1.msra.mxu0 0.0
    %116 = vmatprep.subr.mxu0 0.0
    %117 = vmatpush1.msra.mxu0 0.0
    %118 = vmatprep.subr.mxu0 0.0
    %119 = vmatpush1.msra.mxu0 0.0
    %120 = vmatprep.subr.mxu0 0.0
    %121 = vmatpush1.msra.mxu0 0.0
    %122 = vmatprep.subr.mxu0 0.0
    %123 = vmatpush1.msra.mxu0 0.0
    %124 = vmatprep.subr.mxu0 0.0
    %125 = vmatpush1.msra.mxu0 0.0
    %126 = vmatprep.mubr.f32.mxu0 0.0
    %127 = vmatmul.mubr.f32.gmra.mrb[0].mxu0 %v45
    %v128 = vpop.f32.mrb[0].mxu0
    %v129 = vadd.f32 0.0, %v128
    %v130 = vpop.f32.mrb[0].mxu0
    %131 = vdwg.mxu0
    %s132 = sld [smem:[#allocation3]]
    %v133 = vmul.f32 %v45, %v45
    %134 = vadd.xlane.f32.xlu0 %v133
    %v135 = vpop.xlane.xlu0 %134
    %v136 = vmax.f32 %v135, 1e-24
    %v137 = vrsqrt.pop %v136
    %v138 = vmul.f32 %v129, %v137
    %v139 = vld [vmem:[%s2] sm:$0x1]
    %v141 = vlaneseq
    %v142 = vshrl.u32 %v141, 7
    %v143 = vsub.s32 0, %v142
    %v144 = vrot.slane %v139, %v143
    %v146 = vadd.f32 %v138, %v144
    %p147 = scmp.eq.s32.totalorder 0, 0
    // Predicated region
    $region26: #{tpu_custom_call.1} parent=1 // pred_check
      %p148 = pneg %p147
    $region27: #{tpu_custom_call.1} parent=1 // pred_check_branch
      %150 = sbr.rel (%p148) target = $region29
    $region28: #{tpu_custom_call.1} parent=1 // pred_region
      %v151 = vmul.f32 %v46, %v46
      %v152 = vmul.f32 %v47, %v47
      %v153 = vmul.f32 %v48, %v48
      %v154 = vmul.f32 %v49, %v49
      %v155 = vmul.f32 %v50, %v50
      %v156 = vmul.f32 %v51, %v51
      %v157 = vmul.f32 %v52, %v52
      %v158 = vmul.f32 %v53, %v53
      %v159 = vmul.f32 %v54, %v54
      %v160 = vmul.f32 %v55, %v55
      %v161 = vmul.f32 %v56, %v56
      %v162 = vmul.f32 %v57, %v57
      %v163 = vmul.f32 %v58, %v58
      %v164 = vmul.f32 %v59, %v59
      %v165 = vmul.f32 %v60, %v60
      %v166 = vmul.f32 %v61, %v61
      %167 = vmatprep.subr.mxu0 0.0
      %168 = vmatpush1.msra.mxu0 %v151
      %169 = vmatprep.subr.mxu0 0.0
      %170 = vmatpush1.msra.mxu0 %v152
      %171 = vmatprep.subr.mxu0 0.0
      %172 = vmatpush1.msra.mxu0 %v153
      %173 = vmatprep.subr.mxu0 0.0
      %174 = vmatpush1.msra.mxu0 %v154
      %175 = vmatprep.subr.mxu0 0.0
      %176 = vmatpush1.msra.mxu0 %v155
      %177 = vmatprep.subr.mxu0 0.0
      %178 = vmatpush1.msra.mxu0 %v156
      %179 = vmatprep.subr.mxu0 0.0
      %180 = vmatpush1.msra.mxu0 %v157
      %181 = vmatprep.subr.mxu0 0.0
      %182 = vmatpush1.msra.mxu0 %v158
      %183 = vmatprep.subr.mxu0 0.0
      %184 = vmatpush1.msra.mxu0 %v159
      %185 = vmatprep.subr.mxu0 0.0
      %186 = vmatpush1.msra.mxu0 %v160
      %187 = vmatprep.subr.mxu0 0.0
      %188 = vmatpush1.msra.mxu0 %v161
      %189 = vmatprep.subr.mxu0 0.0
      %190 = vmatpush1.msra.mxu0 %v162
      %191 = vmatprep.subr.mxu0 0.0
      %192 = vmatpush1.msra.mxu0 %v163
      %193 = vmatprep.subr.mxu0 0.0
      %194 = vmatpush1.msra.mxu0 %v164
      %195 = vmatprep.subr.mxu0 0.0
      %196 = vmatpush1.msra.mxu0 %v165
      %197 = vmatprep.subr.mxu0 0.0
      %198 = vmatpush1.msra.mxu0 %v166
      %199 = vmatprep.subr.mxu0 0.0
      %200 = vmatpush1.msra.mxu0 0.0
      %201 = vmatprep.subr.mxu0 0.0
      %202 = vmatpush1.msra.mxu0 0.0
      %203 = vmatprep.subr.mxu0 0.0
      %204 = vmatpush1.msra.mxu0 0.0
      %205 = vmatprep.subr.mxu0 0.0
      %206 = vmatpush1.msra.mxu0 0.0
      %207 = vmatprep.subr.mxu0 0.0
      %208 = vmatpush1.msra.mxu0 0.0
      %209 = vmatprep.subr.mxu0 0.0
      %210 = vmatpush1.msra.mxu0 0.0
      %211 = vmatprep.subr.mxu0 0.0
      %212 = vmatpush1.msra.mxu0 0.0
      %213 = vmatprep.subr.mxu0 0.0
      %214 = vmatpush1.msra.mxu0 0.0
      %215 = vmatprep.subr.mxu0 0.0
      %216 = vmatpush1.msra.mxu0 0.0
      %217 = vmatprep.subr.mxu0 0.0
      %218 = vmatpush1.msra.mxu0 0.0
      %219 = vmatprep.subr.mxu0 0.0
      %220 = vmatpush1.msra.mxu0 0.0
      %221 = vmatprep.subr.mxu0 0.0
      %222 = vmatpush1.msra.mxu0 0.0
      %223 = vmatprep.subr.mxu0 0.0
      %224 = vmatpush1.msra.mxu0 0.0
      %225 = vmatprep.subr.mxu0 0.0
      %226 = vmatpush1.msra.mxu0 0.0
      %227 = vmatprep.subr.mxu0 0.0
      %228 = vmatpush1.msra.mxu0 0.0
      %229 = vmatprep.subr.mxu0 0.0
      %230 = vmatpush1.msra.mxu0 0.0
      %231 = vmatprep.mubr.f32.mxu0 0.0
      %232 = vmatmul.mubr.f32.gmra.mrb[0].mxu0 1.0
      %v233 = vpop.f32.mrb[0].mxu0
      %v234 = vadd.f32 0.0, %v233
      %v235 = vpop.f32.mrb[0].mxu0
      %236 = vdwg.mxu0
      %237 = vst [vmem:[#allocation2] sm:$0x1] %v234
    $region29: #{tpu_custom_call.1} parent=1 // pred_fallthru
      _
    %v238 = vld [vmem:[#allocation2] sm:$0x1]
    %v239 = vmax.f32 %v238, 1e-30
    %v240 = vrsqrt.pop %v239
    %v241 = vstv %s132
    %v242 = vmul.f32 %v240, %v241
    %v244 = vlaneseq
    %v245 = vshrl.u32 %v244, 7
    %v246 = vsub.s32 0, %v245
    %v247 = vrot.slane %v242, %v246
    %v249 = vmul.f32 %v146, %v247
    %250 = vst [vmem:[#allocation9] sm:$0xff] %v249
    // Predicated region
    $region30: #{tpu_custom_call.1} parent=1 // pred_check
      _
    $region31: #{tpu_custom_call.1} parent=1 // pred_check_branch
      %252 = sbr.rel (0) target = $region33
    $region32: #{tpu_custom_call.1} parent=1 // pred_region
      %s254 = ssub.s32 128, 128
      %255 = vsyncadd [#allocation6], %s254
      %s257 = sshll.u32 [#allocation9], 4
      %s258 = int_to_ptr.vmem [resolvable:$true] %s257
      %260 = dma.vmem_to_hbm [thread:$0]  %s258, 128, %s4, [#allocation6]
    $region33: #{tpu_custom_call.1} parent=1 // pred_fallthru
      _
    // Predicated region
    $region34: #{tpu_custom_call.1} parent=1 // pred_check
      _
    $region35: #{tpu_custom_call.1} parent=1 // pred_check_branch
      %262 = sbr.rel (0) target = $region37
    $region36: #{tpu_custom_call.1} parent=1 // pred_region
      %263 = dma.done [#allocation6], 128
    $region37: #{tpu_custom_call.1} parent=1 // pred_fallthru
      _
    %264 = vsyncpa [#allocation5], 1
    %265 = vsyncpa [#allocation8], 1
    %266 = vsyncpa [#allocation6], 1

</llo_original>
